<compile_context>
chip_gen: v5e
topology: v5e:2x2
jax: 0.10.0
libtpu: 0.0.40
codegen_flags: <defaults>
</compile_context>

<pallas_src>
import jax
import jax.numpy as jnp
from jax import lax
from jax.experimental import pallas as pl
from jax.experimental.pallas import tpu as pltpu

# ---- model dimensions (small, synthetic) -----------------------------------
B = 2                      # batch
C, H, W = 4, 16, 16
D_IN = C * H * W           # 1024 flattened input features
H_ENC = 64                 # encoder backbone hidden size
Z_STYLE = 16
Z_CORE = 16
N_OUT = 4                  # n_outputs (dim of y)

H_FUSED = 2 * H_ENC        # 128 : encoder output [h_style | h_core]
Z_CAT = Z_CORE + Z_STYLE   # 32
Y_PAD = 16                 # y padded (incl. the constant-1 lane) to 16 lanes
ONES_LANE = N_OUT          # index of the constant-1 lane inside y_pad

# ---- output-slab lane layout (single source of truth: pack + kernel + split)
SL_MEAN_CORE = 0
SL_MEAN_STYLE = Z_CORE                 # 16
SL_LV_CORE = Z_CAT                     # 32
SL_LV_STYLE = Z_CAT + Z_CORE           # 48
SL_Z = 2 * Z_CAT                       # 64
SL_Z_CORE = SL_Z                       # 64
SL_Z_STYLE = SL_Z + Z_CORE             # 80
SL_PRIOR_MEAN = 3 * Z_CAT              # 96
SL_PRIOR_LV = 3 * Z_CAT + Z_CORE       # 112
SL_W = 4 * Z_CAT                       # 128 lanes total
HEAD_W = 2 * SL_W                      # 256: [base slab | lv-selector]
LV_SEL = SL_W + SL_Z                   # 192: 0.5*lv_core|0.5*lv_style live here

# ---- aux lane layout: [eps128 | y_pad1]
AUX_EPS = 0                            # 128 lanes, nonzero only at SL_Z..SL_Z+32
AUX_Y = SL_W                           # 16 lanes: [y | 1.0 | zeros]
AUX_W = AUX_Y + Y_PAD                  # 144

# ---- b_pack lane layout: [b_enc | b_dec], both 128-lane aligned groups
BP_ENC = 0
BP_DEC = H_FUSED                       # 128
BP_W = BP_DEC + D_IN                   # 1152


def vae_kernel(x_ref, aux_ref, w_enc_ref, w_small_ref, w_dec_ref, b_pack_ref,
               out_small_ref, recon_ref):
    # ---- fused encoder backbone: h = relu(x @ [w_se | w_ce] + [b_se | b_ce])
    x = x_ref[...]                                          # [BP, D_IN] bf16
    b_enc = b_pack_ref[:, BP_ENC:BP_ENC + H_FUSED]          # [1, 128]
    h = jnp.maximum(
        jnp.dot(x, w_enc_ref[...], preferred_element_type=jnp.float32) + b_enc,
        0.0)                                                # [BP, 128] f32

    # ---- fused heads + priors (+ all their biases via the constant-1 y lane)
    # columns 0:128   -> base slab [mc|ms|lvc|lvs|mc|ms|pm|plv]
    # columns 128:256 -> 0.5*log_var at the z lanes, zero elsewhere
    y_pad = aux_ref[:, AUX_Y:AUX_Y + Y_PAD]                 # [BP, 16]
    heads = (jnp.dot(h, w_small_ref[0:H_FUSED, :],
                     preferred_element_type=jnp.float32)
             + jnp.dot(y_pad, w_small_ref[H_FUSED:H_FUSED + Y_PAD, :],
                       preferred_element_type=jnp.float32))  # [BP, 256]

    base = heads[:, 0:SL_W]                                 # [BP, 128]
    half_lv = heads[:, SL_W:HEAD_W]                         # [BP, 128]
    eps = aux_ref[:, AUX_EPS:AUX_EPS + SL_W]                # zero outside z lanes

    # single 128-lane reparameterization; z_cat lands at its final lanes
    slab = base + jnp.exp(half_lv) * eps
    out_small_ref[...] = slab                               # ONE dense 128-lane store

    # ---- fused decoder: [z_core | z_style] @ [w_dec_c ; w_dec_s] + b_dec
    z_cat = slab[:, SL_Z:SL_Z + Z_CAT].astype(jnp.bfloat16)  # [BP, 32]
    b_dec = b_pack_ref[:, BP_DEC:BP_DEC + D_IN]              # [1, 1024]
    recon_ref[...] = jnp.dot(z_cat, w_dec_ref[...],
                             preferred_element_type=jnp.float32) + b_dec


# -----------------------------------------------------------------------------
# parameter init (logical, unpacked) and host-side packing into slabs
# -----------------------------------------------------------------------------
def init_params(key):
    """Deterministic synthetic parameters. Weights stored as [in, out]."""
    ks = jax.random.split(key, 32)
    s = 0.05

    def w(k, shape):
        return (s * jax.random.normal(k, shape)).astype(jnp.float32)

    def b(k, n):
        return (s * jax.random.normal(k, (1, n))).astype(jnp.float32)

    return dict(
        w_se=w(ks[0], (D_IN, H_ENC)), b_se=b(ks[1], H_ENC),
        w_ce=w(ks[2], (D_IN, H_ENC)), b_ce=b(ks[3], H_ENC),
        w_sm=w(ks[4], (H_ENC, Z_STYLE)), b_sm=b(ks[5], Z_STYLE),
        w_sv=w(ks[6], (H_ENC, Z_STYLE)), b_sv=b(ks[7], Z_STYLE),
        w_cm_x=w(ks[8], (H_ENC, Z_CORE)), w_cm_y=w(ks[9], (N_OUT, Z_CORE)),
        b_cm=b(ks[10], Z_CORE),
        w_cv_x=w(ks[11], (H_ENC, Z_CORE)), w_cv_y=w(ks[12], (N_OUT, Z_CORE)),
        b_cv=b(ks[13], Z_CORE),
        w_pm=w(ks[14], (N_OUT, Z_CORE)), b_pm=b(ks[15], Z_CORE),
        w_pv=w(ks[16], (N_OUT, Z_CORE)), b_pv=b(ks[17], Z_CORE),
        w_dec_c=w(ks[18], (Z_CORE, D_IN)), w_dec_s=w(ks[19], (Z_STYLE, D_IN)),
        b_dec=b(ks[20], D_IN),
    )


def _assemble_cols(blocks, n_rows):
    """Build an [n_rows, HEAD_W] matrix from {lane_offset: [n_rows, 16]} blocks."""
    out = [jnp.zeros((n_rows, Z_CORE), jnp.float32)] * (HEAD_W // Z_CORE)
    for off, blk in blocks.items():
        assert off % Z_CORE == 0 and blk.shape == (n_rows, Z_CORE)
        out[off // Z_CORE] = blk
    return jnp.concatenate(out, axis=1)


def pack_params(p):
    """Pack logical params into 4 contiguous slabs for the kernel."""
    f32 = jnp.float32

    # fused encoder: [w_se | w_ce] -> [D_IN, 128] bf16, b_enc = [b_se | b_ce]
    w_enc = jnp.concatenate([p["w_se"], p["w_ce"]], axis=1).astype(jnp.bfloat16)
    b_enc = jnp.concatenate([p["b_se"], p["b_ce"]], axis=1)        # [1, 128]

    # fused head matrix [144, 256]: rows 0:64 multiply h_style, 64:128 h_core,
    # 128:132 y, row 132 the constant-1 bias lane, rest zero.  Column layout is
    # keyed on the SL_* slab constants (mean dup at the z lanes; 0.5*log_var in
    # the LV_SEL half so exp() of the matmul output is the std directly).
    style_rows = _assemble_cols({
        SL_MEAN_STYLE: p["w_sm"], SL_LV_STYLE: p["w_sv"],
        SL_Z_STYLE: p["w_sm"], LV_SEL + Z_CORE: 0.5 * p["w_sv"]}, H_ENC)
    core_rows = _assemble_cols({
        SL_MEAN_CORE: p["w_cm_x"], SL_LV_CORE: p["w_cv_x"],
        SL_Z_CORE: p["w_cm_x"], LV_SEL: 0.5 * p["w_cv_x"]}, H_ENC)
    y_rows = _assemble_cols({
        SL_MEAN_CORE: p["w_cm_y"], SL_LV_CORE: p["w_cv_y"],
        SL_Z_CORE: p["w_cm_y"], SL_PRIOR_MEAN: p["w_pm"],
        SL_PRIOR_LV: p["w_pv"], LV_SEL: 0.5 * p["w_cv_y"]}, N_OUT)
    bias_row = _assemble_cols({
        SL_MEAN_CORE: p["b_cm"], SL_MEAN_STYLE: p["b_sm"],
        SL_LV_CORE: p["b_cv"], SL_LV_STYLE: p["b_sv"],
        SL_Z_CORE: p["b_cm"], SL_Z_STYLE: p["b_sm"],
        SL_PRIOR_MEAN: p["b_pm"], SL_PRIOR_LV: p["b_pv"],
        LV_SEL: 0.5 * p["b_cv"], LV_SEL + Z_CORE: 0.5 * p["b_sv"]}, 1)
    w_small = jnp.concatenate(
        [style_rows, core_rows, y_rows, bias_row,
         jnp.zeros((Y_PAD - N_OUT - 1, HEAD_W), f32)], axis=0)     # [144, 256]

    # fused decoder: rows match z_cat = [z_core | z_style]
    w_dec = jnp.concatenate([p["w_dec_c"], p["w_dec_s"]],
                            axis=0).astype(jnp.bfloat16)           # [32, 1024]

    # remaining biases: whole 128-lane-aligned groups [b_enc | b_dec]
    b_pack = jnp.concatenate([b_enc, p["b_dec"]], axis=1)          # [1, 1152]

    return dict(w_enc=w_enc, w_small=w_small, w_dec=w_dec, b_pack=b_pack)


# -----------------------------------------------------------------------------
# wrapper
# -----------------------------------------------------------------------------
@jax.jit
def concept_learning_vae_forward(x_nchw, y, eps_style, eps_core, packed):
    bsz = x_nchw.shape[0]
    bpad = max(8, -(-bsz // 8) * 8)        # pad batch to the f32 sublane tile

    x_flat = x_nchw.reshape(bsz, -1).astype(jnp.bfloat16)
    y = y.astype(jnp.float32)

    # aux = [eps128 | y_pad1]; eps sits at the z lanes of the output slab,
    # the constant-1 lane routes the packed bias row through the y matmul.
    eps_cat = jnp.concatenate(
        [eps_core.astype(jnp.float32), eps_style.astype(jnp.float32)], axis=1)
    eps128 = jnp.zeros((bsz, SL_W), jnp.float32)
    eps128 = eps128.at[:, SL_Z:SL_Z + Z_CAT].set(eps_cat)
    y_pad1 = jnp.concatenate(
        [y, jnp.ones((bsz, 1), jnp.float32),
         jnp.zeros((bsz, Y_PAD - N_OUT - 1), jnp.float32)], axis=1)
    aux = jnp.concatenate([eps128, y_pad1], axis=1)                # [B, 144]

    pad = ((0, bpad - bsz), (0, 0))
    x_flat = jnp.pad(x_flat, pad)
    aux = jnp.pad(aux, pad)

    vmem = pl.BlockSpec(memory_space=pltpu.MemorySpace.VMEM)
    out_small, recon = pl.pallas_call(
        vae_kernel,
        out_shape=(jax.ShapeDtypeStruct((bpad, SL_W), jnp.float32),
                   jax.ShapeDtypeStruct((bpad, D_IN), jnp.float32)),
        in_specs=[vmem] * 6,
        out_specs=(vmem, vmem),
    )(x_flat, aux, packed["w_enc"], packed["w_small"], packed["w_dec"],
      packed["b_pack"])

    o = out_small[:bsz]
    return {
        "mean_core": o[:, SL_MEAN_CORE:SL_MEAN_CORE + Z_CORE],
        "log_var_core": o[:, SL_LV_CORE:SL_LV_CORE + Z_CORE],
        "z_core": o[:, SL_Z_CORE:SL_Z_CORE + Z_CORE],
        "mean_style": o[:, SL_MEAN_STYLE:SL_MEAN_STYLE + Z_STYLE],
        "log_var_style": o[:, SL_LV_STYLE:SL_LV_STYLE + Z_STYLE],
        "z_style": o[:, SL_Z_STYLE:SL_Z_STYLE + Z_STYLE],
        "x_reconstructed": recon[:bsz].reshape(bsz, C, H, W),
        "prior_mean_core": o[:, SL_PRIOR_MEAN:SL_PRIOR_MEAN + Z_CORE],
        "prior_log_var_core": o[:, SL_PRIOR_LV:SL_PRIOR_LV + Z_CORE],
    }


# -----------------------------------------------------------------------------
# pure-JAX reference (mirrors the PyTorch module, with the same bf16 rounding
# of the large weights / inputs that the kernel uses)
# -----------------------------------------------------------------------------
def reference_forward(x_nchw, y, eps_style, eps_core, p):
    P = lax.Precision.HIGHEST
    f32 = jnp.float32
    bf = lambda w: w.astype(jnp.bfloat16).astype(f32)
    x = x_nchw.reshape(x_nchw.shape[0], -1).astype(jnp.bfloat16).astype(f32)
    y = y.astype(f32)

    h_s = jnp.maximum(jnp.dot(x, bf(p["w_se"]), precision=P) + p["b_se"], 0.0)
    h_c = jnp.maximum(jnp.dot(x, bf(p["w_ce"]), precision=P) + p["b_ce"], 0.0)

    mean_style = jnp.dot(h_s, p["w_sm"], precision=P) + p["b_sm"]
    log_var_style = jnp.dot(h_s, p["w_sv"], precision=P) + p["b_sv"]
    z_style = mean_style + jnp.exp(0.5 * log_var_style) * eps_style

    mean_core = (jnp.dot(h_c, p["w_cm_x"], precision=P)
                 + jnp.dot(y, p["w_cm_y"], precision=P) + p["b_cm"])
    log_var_core = (jnp.dot(h_c, p["w_cv_x"], precision=P)
                    + jnp.dot(y, p["w_cv_y"], precision=P) + p["b_cv"])
    z_core = mean_core + jnp.exp(0.5 * log_var_core) * eps_core

    prior_mean = jnp.dot(y, p["w_pm"], precision=P) + p["b_pm"]
    prior_log_var = jnp.dot(y, p["w_pv"], precision=P) + p["b_pv"]

    recon = (jnp.dot(z_core.astype(jnp.bfloat16).astype(f32), bf(p["w_dec_c"]),
                     precision=P)
             + jnp.dot(z_style.astype(jnp.bfloat16).astype(f32), bf(p["w_dec_s"]),
                       precision=P)
             + p["b_dec"])
    return {
        "mean_core": mean_core, "log_var_core": log_var_core, "z_core": z_core,
        "mean_style": mean_style, "log_var_style": log_var_style,
        "z_style": z_style,
        "x_reconstructed": recon.reshape(x_nchw.shape[0], C, H, W),
        "prior_mean_core": prior_mean, "prior_log_var_core": prior_log_var,
    }


if __name__ == "__main__":
    key = jax.random.PRNGKey(0)
    k_x, k_y, k_es, k_ec, k_p = jax.random.split(key, 5)

    x = jax.random.normal(k_x, (B, C, H, W), dtype=jnp.float32)
    y = jax.random.normal(k_y, (B, N_OUT), dtype=jnp.float32)
    eps_style = jax.random.normal(k_es, (B, Z_STYLE), dtype=jnp.float32)
    eps_core = jax.random.normal(k_ec, (B, Z_CORE), dtype=jnp.float32)

    params = init_params(k_p)
    packed = pack_params(params)

    out = concept_learning_vae_forward(x, y, eps_style, eps_core, packed)
    jax.block_until_ready(out)

    # shape sanity
    assert out["x_reconstructed"].shape == (B, C, H, W)
    assert out["z_core"].shape == (B, Z_CORE)
    assert out["z_style"].shape == (B, Z_STYLE)
    assert out["prior_mean_core"].shape == (B, Z_CORE)
    assert out["prior_log_var_core"].shape == (B, Z_CORE)

    # numerical check against pure-JAX reference.  Priors depend only on the
    # f32 y-path weights, so they get a tight tolerance (catches any packing /
    # column-layout mistakes); the rest go through bf16 weights + MXU
    # accumulation-order differences and get a looser one.
    ref = reference_forward(x, y, eps_style, eps_core, params)
    tight = {"prior_mean_core": 5e-3, "prior_log_var_core": 5e-3}
    for k in ref:
        tol = tight.get(k, 5e-2)
        err = float(jnp.max(jnp.abs(out[k] - ref[k])))
        assert err < tol, f"{k}: max abs err {err} (tol {tol})"

    print("KERNEL_OK")
</pallas_src>

<mosaic_0001>
module attributes {stable_mosaic.version = 11 : i64} {
  func.func @vae_kernel(%arg0: memref<8x1024xbf16, #tpu.memory_space<vmem>>, %arg1: memref<8x144xf32, #tpu.memory_space<vmem>>, %arg2: memref<1024x128xbf16, #tpu.memory_space<vmem>>, %arg3: memref<144x256xf32, #tpu.memory_space<vmem>>, %arg4: memref<32x1024xbf16, #tpu.memory_space<vmem>>, %arg5: memref<1x1152xf32, #tpu.memory_space<vmem>>, %arg6: memref<8x128xf32, #tpu.memory_space<vmem>>, %arg7: memref<8x1024xf32, #tpu.memory_space<vmem>>) attributes {dimension_semantics = [], scalar_prefetch = 0 : i64, scratch_operands = 0 : i64, tpu.core_type = #tpu.core_type<tc>} {
    %c0 = arith.constant 0 : index
    %c0_0 = arith.constant 0 : index
    %0 = vector.load %arg0[%c0, %c0_0] : memref<8x1024xbf16, #tpu.memory_space<vmem>>, vector<8x1024xbf16>
    %c0_1 = arith.constant 0 : index
    %c0_2 = arith.constant 0 : index
    %1 = vector.load %arg5[%c0_1, %c0_2] : memref<1x1152xf32, #tpu.memory_space<vmem>>, vector<1x128xf32>
    %c0_3 = arith.constant 0 : index
    %c0_4 = arith.constant 0 : index
    %2 = vector.load %arg2[%c0_3, %c0_4] : memref<1024x128xbf16, #tpu.memory_space<vmem>>, vector<1024x128xbf16>
    %cst = arith.constant dense<0.000000e+00> : vector<8x128xf32>
    %3 = tpu.matmul %0, %2, %cst {dimension_numbers = #tpu.dot_dimension_numbers<[1], [0], [0], [1], [0, 0, 1, 1], [], []>} : vector<8x1024xbf16>, vector<1024x128xbf16>, vector<8x128xf32> -> vector<8x128xf32>
    %4 = vector.broadcast %1 : vector<1x128xf32> to vector<8x128xf32>
    %5 = arith.addf %3, %4 : vector<8x128xf32>
    %cst_5 = arith.constant 0.000000e+00 : f32
    %6 = vector.broadcast %cst_5 : f32 to vector<8x128xf32>
    %7 = arith.maximumf %5, %6 : vector<8x128xf32>
    %c0_6 = arith.constant 0 : index
    %c128 = arith.constant 128 : index
    %8 = vector.load %arg1[%c0_6, %c128] : memref<8x144xf32, #tpu.memory_space<vmem>>, vector<8x16xf32>
    %c0_7 = arith.constant 0 : index
    %c0_8 = arith.constant 0 : index
    %9 = vector.load %arg3[%c0_7, %c0_8] : memref<144x256xf32, #tpu.memory_space<vmem>>, vector<128x256xf32>
    %cst_9 = arith.constant dense<0.000000e+00> : vector<8x256xf32>
    %10 = tpu.matmul %7, %9, %cst_9 {dimension_numbers = #tpu.dot_dimension_numbers<[1], [0], [0], [1], [0, 0, 1, 1], [], []>} : vector<8x128xf32>, vector<128x256xf32>, vector<8x256xf32> -> vector<8x256xf32>
    %c128_10 = arith.constant 128 : index
    %c0_11 = arith.constant 0 : index
    %11 = vector.load %arg3[%c128_10, %c0_11] : memref<144x256xf32, #tpu.memory_space<vmem>>, vector<16x256xf32>
    %cst_12 = arith.constant dense<0.000000e+00> : vector<8x256xf32>
    %12 = tpu.matmul %8, %11, %cst_12 {dimension_numbers = #tpu.dot_dimension_numbers<[1], [0], [0], [1], [0, 0, 1, 1], [], []>} : vector<8x16xf32>, vector<16x256xf32>, vector<8x256xf32> -> vector<8x256xf32>
    %13 = arith.addf %10, %12 : vector<8x256xf32>
    %14 = vector.extract_strided_slice %13 {offsets = [0, 0], sizes = [8, 128], strides = [1, 1]} : vector<8x256xf32> to vector<8x128xf32>
    %15 = vector.extract_strided_slice %13 {offsets = [0, 128], sizes = [8, 128], strides = [1, 1]} : vector<8x256xf32> to vector<8x128xf32>
    %c0_13 = arith.constant 0 : index
    %c0_14 = arith.constant 0 : index
    %16 = vector.load %arg1[%c0_13, %c0_14] : memref<8x144xf32, #tpu.memory_space<vmem>>, vector<8x128xf32>
    %17 = math.exp %15 : vector<8x128xf32>
    %18 = arith.mulf %17, %16 : vector<8x128xf32>
    %19 = arith.addf %14, %18 : vector<8x128xf32>
    %c0_15 = arith.constant 0 : index
    %c0_16 = arith.constant 0 : index
    %20 = vector.load %arg6[%c0_15, %c0_16] : memref<8x128xf32, #tpu.memory_space<vmem>>, vector<8x128xf32>
    tpu.vector_store %arg6[%c0_15, %c0_16], %19 {strides = array<i32>} : memref<8x128xf32, #tpu.memory_space<vmem>>, vector<8x128xf32>,
    %21 = vector.extract_strided_slice %19 {offsets = [0, 64], sizes = [8, 32], strides = [1, 1]} : vector<8x128xf32> to vector<8x32xf32>
    %22 = arith.truncf %21 : vector<8x32xf32> to vector<8x32xbf16>
    %c0_17 = arith.constant 0 : index
    %c128_18 = arith.constant 128 : index
    %23 = vector.load %arg5[%c0_17, %c128_18] : memref<1x1152xf32, #tpu.memory_space<vmem>>, vector<1x1024xf32>
    %c0_19 = arith.constant 0 : index
    %c0_20 = arith.constant 0 : index
    %24 = vector.load %arg4[%c0_19, %c0_20] : memref<32x1024xbf16, #tpu.memory_space<vmem>>, vector<32x1024xbf16>
    %cst_21 = arith.constant dense<0.000000e+00> : vector<8x1024xf32>
    %25 = tpu.matmul %22, %24, %cst_21 {dimension_numbers = #tpu.dot_dimension_numbers<[1], [0], [0], [1], [0, 0, 1, 1], [], []>} : vector<8x32xbf16>, vector<32x1024xbf16>, vector<8x1024xf32> -> vector<8x1024xf32>
    %26 = vector.broadcast %23 : vector<1x1024xf32> to vector<8x1024xf32>
    %27 = arith.addf %25, %26 : vector<8x1024xf32>
    %c0_22 = arith.constant 0 : index
    %c0_23 = arith.constant 0 : index
    %28 = vector.load %arg7[%c0_22, %c0_23] : memref<8x1024xf32, #tpu.memory_space<vmem>>, vector<8x1024xf32>
    tpu.vector_store %arg7[%c0_22, %c0_23], %27 {strides = array<i32>} : memref<8x1024xf32, #tpu.memory_space<vmem>>, vector<8x1024xf32>,
    return
  }
}

</mosaic_0001>

<llo_original>
// kernel: concept_learning_vae_forward.1
$region0: #{concept_learning_vae_forward.1}
  #allocation0 [shape = 'u32[]', space=smem, size = 0x4, offset = 0x4, fixed_abs, tag = 'smem constant byte address 0x4 - core index']
  #allocation1 [shape = 'u32[72,128]{1,0:T(1,128)}', space=vmem, size = 0x9000, scoped, tag = 'internal scratch']
  %s0 = inlined_call_operand.vmem [shape: bf16[8,1024], index: 0, kind: input, shape index: {}]
  %s1 = inlined_call_operand.vmem [shape: f32[8,144], index: 1, kind: input, shape index: {}]
  %s2 = inlined_call_operand.hbm [shape: bf16[1024,128], index: 2, kind: input, shape index: {}]
  %s3 = inlined_call_operand.vmem [shape: f32[144,256], index: 3, kind: input, shape index: {}]
  %s4 = inlined_call_operand.hbm [shape: bf16[32,1024], index: 4, kind: input, shape index: {}]
  %s5 = inlined_call_operand.vmem [shape: f32[1,1152], index: 5, kind: input, shape index: {}]
  %s6 = inlined_call_operand.vmem [shape: f32[8,128], index: 6, kind: output, shape index: {0}]
  %s7 = inlined_call_operand.vmem [shape: f32[8,1024], index: 7, kind: output, shape index: {1}]
  %8 = xla_tuple %s6, %s7
  %s9 = sld [smem:[#allocation0]]
  $region50: #{concept_learning_vae_forward.1} parent=0
    _
  %s11 = ssub.s32 1, %s9
  %s12 = scalar_select 0, %s11, %s9
  $region1: #{concept_learning_vae_forward.1} parent=0
    #allocation2 [shape = 'u8[262144]{0}', space=vmem, size = 0x40000, scoped, tag = 'input window, operand 2, single buffered']
    #allocation3 [shape = 's32[1]{0}', space=sflag, size = 0x4, scoped, tag = 'scoped memory for concept_learning_vae_forward.1']
    #allocation4 [shape = 'u8[65536]{0}', space=vmem, size = 0x10000, scoped, tag = 'input window, operand 4, single buffered']
    #allocation5 [shape = 's32[1]{0}', space=sflag, size = 0x4, scoped, tag = 'scoped memory for concept_learning_vae_forward.1']
    %13 = vsyncpa [#allocation3], 0
    %14 = vsyncpa [#allocation5], 0
    // Predicated region
    $region2: #{concept_learning_vae_forward.1} parent=1 // pred_check
      _
    $region3: #{concept_learning_vae_forward.1} parent=1 // pred_check_branch
      %16 = sbr.rel (0) target = $region5
    $region4: #{concept_learning_vae_forward.1} parent=1 // pred_region
      _
    $region5: #{concept_learning_vae_forward.1} parent=1 // pred_fallthru
      _
    // Predicated region
    $region6: #{concept_learning_vae_forward.1} parent=1 // pred_check
      _
    $region7: #{concept_learning_vae_forward.1} parent=1 // pred_check_branch
      %18 = sbr.rel (0) target = $region9
    $region8: #{concept_learning_vae_forward.1} parent=1 // pred_region
      _
    $region9: #{concept_learning_vae_forward.1} parent=1 // pred_fallthru
      _
    // Predicated region
    $region10: #{concept_learning_vae_forward.1} parent=1 // pred_check
      _
    $region11: #{concept_learning_vae_forward.1} parent=1 // pred_check_branch
      %20 = sbr.rel (0) target = $region13
    $region12: #{concept_learning_vae_forward.1} parent=1 // pred_region
      %22 = vsyncadd [#allocation3], 0
      %s23 = sshll.u32 %s2, 4
      %s24 = int_to_ptr.hbm [resolvable:$true] %s23
      %s25 = sshll.u32 [#allocation2], 4
      %s26 = int_to_ptr.vmem [resolvable:$true] %s25
      %31 = dma.hbm_to_vmem [thread:$0]  %s24, 8192, %s26, [#allocation3], 64, 64, 4
    $region13: #{concept_learning_vae_forward.1} parent=1 // pred_fallthru
      _
    // Predicated region
    $region14: #{concept_learning_vae_forward.1} parent=1 // pred_check
      _
    $region15: #{concept_learning_vae_forward.1} parent=1 // pred_check_branch
      %33 = sbr.rel (0) target = $region17
    $region16: #{concept_learning_vae_forward.1} parent=1 // pred_region
      _
    $region17: #{concept_learning_vae_forward.1} parent=1 // pred_fallthru
      _
    // Predicated region
    $region18: #{concept_learning_vae_forward.1} parent=1 // pred_check
      _
    $region19: #{concept_learning_vae_forward.1} parent=1 // pred_check_branch
      %35 = sbr.rel (0) target = $region21
    $region20: #{concept_learning_vae_forward.1} parent=1 // pred_region
      %37 = vsyncadd [#allocation5], 0
      %s38 = sshll.u32 %s4, 4
      %s39 = int_to_ptr.hbm [resolvable:$true] %s38
      %s40 = sshll.u32 [#allocation4], 4
      %s41 = int_to_ptr.vmem [resolvable:$true] %s40
      %46 = dma.hbm_to_vmem [thread:$0]  %s39, 2048, %s41, [#allocation5], 512, 512, 32
    $region21: #{concept_learning_vae_forward.1} parent=1 // pred_fallthru
      _
    // Predicated region
    $region22: #{concept_learning_vae_forward.1} parent=1 // pred_check
      _
    $region23: #{concept_learning_vae_forward.1} parent=1 // pred_check_branch
      %48 = sbr.rel (0) target = $region25
    $region24: #{concept_learning_vae_forward.1} parent=1 // pred_region
      _
    $region25: #{concept_learning_vae_forward.1} parent=1 // pred_fallthru
      _
    // Predicated region
    $region26: #{concept_learning_vae_forward.1} parent=1 // pred_check
      _
    $region27: #{concept_learning_vae_forward.1} parent=1 // pred_check_branch
      %50 = sbr.rel (0) target = $region29
    $region28: #{concept_learning_vae_forward.1} parent=1 // pred_region
      %52 = dma.done [#allocation3], 8192
    $region29: #{concept_learning_vae_forward.1} parent=1 // pred_fallthru
      _
    // Predicated region
    $region30: #{concept_learning_vae_forward.1} parent=1 // pred_check
      _
    $region31: #{concept_learning_vae_forward.1} parent=1 // pred_check_branch
      %54 = sbr.rel (0) target = $region33
    $region32: #{concept_learning_vae_forward.1} parent=1 // pred_region
      %56 = dma.done [#allocation5], 2048
    $region33: #{concept_learning_vae_forward.1} parent=1 // pred_fallthru
      _
    %v58 = vld [vmem:[%s0] sm:$0xff]
    %v59 = vld [vmem:[%s0 + $0x8] sm:$0xff]
    %v60 = vld [vmem:[%s0 + $0x10] sm:$0xff]
    %v61 = vld [vmem:[%s0 + $0x18] sm:$0xff]
    %v62 = vld [vmem:[%s5] sm:$0x1]
    %v63 = vld [vmem:[#allocation2] sm:$0xf]
    %v64 = vld [vmem:[#allocation2 + $0x4] sm:$0xf]
    %v65 = vld [vmem:[#allocation2 + $0x8] sm:$0xf]
    %v66 = vld [vmem:[#allocation2 + $0xc] sm:$0xf]
    %v67 = vld [vmem:[#allocation2 + $0x10] sm:$0xf]
    %v68 = vld [vmem:[#allocation2 + $0x14] sm:$0xf]
    %v69 = vld [vmem:[#allocation2 + $0x18] sm:$0xf]
    %v70 = vld [vmem:[#allocation2 + $0x1c] sm:$0xf]
    %v71 = vld [vmem:[#allocation2 + $0x20] sm:$0xf]
    %v72 = vld [vmem:[#allocation2 + $0x24] sm:$0xf]
    %v73 = vld [vmem:[#allocation2 + $0x28] sm:$0xf]
    %v74 = vld [vmem:[#allocation2 + $0x2c] sm:$0xf]
    %v75 = vld [vmem:[#allocation2 + $0x30] sm:$0xf]
    %v76 = vld [vmem:[#allocation2 + $0x34] sm:$0xf]
    %v77 = vld [vmem:[#allocation2 + $0x38] sm:$0xf]
    %v78 = vld [vmem:[#allocation2 + $0x3c] sm:$0xf]
    %v79 = vld [vmem:[#allocation2 + $0x40] sm:$0xf]
    %v80 = vld [vmem:[#allocation2 + $0x44] sm:$0xf]
    %v81 = vld [vmem:[#allocation2 + $0x48] sm:$0xf]
    %v82 = vld [vmem:[#allocation2 + $0x4c] sm:$0xf]
    %v83 = vld [vmem:[#allocation2 + $0x50] sm:$0xf]
    %v84 = vld [vmem:[#allocation2 + $0x54] sm:$0xf]
    %v85 = vld [vmem:[#allocation2 + $0x58] sm:$0xf]
    %v86 = vld [vmem:[#allocation2 + $0x5c] sm:$0xf]
    %v87 = vld [vmem:[#allocation2 + $0x60] sm:$0xf]
    %v88 = vld [vmem:[#allocation2 + $0x64] sm:$0xf]
    %v89 = vld [vmem:[#allocation2 + $0x68] sm:$0xf]
    %v90 = vld [vmem:[#allocation2 + $0x6c] sm:$0xf]
    %v91 = vld [vmem:[#allocation2 + $0x70] sm:$0xf]
    %v92 = vld [vmem:[#allocation2 + $0x74] sm:$0xf]
    %v93 = vld [vmem:[#allocation2 + $0x78] sm:$0xf]
    %v94 = vld [vmem:[#allocation2 + $0x7c] sm:$0xf]
    %v95 = vld [vmem:[#allocation2 + $0x80] sm:$0xf]
    %v96 = vld [vmem:[#allocation2 + $0x84] sm:$0xf]
    %v97 = vld [vmem:[#allocation2 + $0x88] sm:$0xf]
    %v98 = vld [vmem:[#allocation2 + $0x8c] sm:$0xf]
    %v99 = vld [vmem:[#allocation2 + $0x90] sm:$0xf]
    %v100 = vld [vmem:[#allocation2 + $0x94] sm:$0xf]
    %v101 = vld [vmem:[#allocation2 + $0x98] sm:$0xf]
    %v102 = vld [vmem:[#allocation2 + $0x9c] sm:$0xf]
    %v103 = vld [vmem:[#allocation2 + $0xa0] sm:$0xf]
    %v104 = vld [vmem:[#allocation2 + $0xa4] sm:$0xf]
    %v105 = vld [vmem:[#allocation2 + $0xa8] sm:$0xf]
    %v106 = vld [vmem:[#allocation2 + $0xac] sm:$0xf]
    %v107 = vld [vmem:[#allocation2 + $0xb0] sm:$0xf]
    %v108 = vld [vmem:[#allocation2 + $0xb4] sm:$0xf]
    %v109 = vld [vmem:[#allocation2 + $0xb8] sm:$0xf]
    %v110 = vld [vmem:[#allocation2 + $0xbc] sm:$0xf]
    %v111 = vld [vmem:[#allocation2 + $0xc0] sm:$0xf]
    %v112 = vld [vmem:[#allocation2 + $0xc4] sm:$0xf]
    %v113 = vld [vmem:[#allocation2 + $0xc8] sm:$0xf]
    %v114 = vld [vmem:[#allocation2 + $0xcc] sm:$0xf]
    %v115 = vld [vmem:[#allocation2 + $0xd0] sm:$0xf]
    %v116 = vld [vmem:[#allocation2 + $0xd4] sm:$0xf]
    %v117 = vld [vmem:[#allocation2 + $0xd8] sm:$0xf]
    %v118 = vld [vmem:[#allocation2 + $0xdc] sm:$0xf]
    %v119 = vld [vmem:[#allocation2 + $0xe0] sm:$0xf]
    %v120 = vld [vmem:[#allocation2 + $0xe4] sm:$0xf]
    %v121 = vld [vmem:[#allocation2 + $0xe8] sm:$0xf]
    %v122 = vld [vmem:[#allocation2 + $0xec] sm:$0xf]
    %v123 = vld [vmem:[#allocation2 + $0xf0] sm:$0xf]
    %v124 = vld [vmem:[#allocation2 + $0xf4] sm:$0xf]
    %v125 = vld [vmem:[#allocation2 + $0xf8] sm:$0xf]
    %v126 = vld [vmem:[#allocation2 + $0xfc] sm:$0xf]
    %v127 = vld [vmem:[#allocation2 + $0x100] sm:$0xf]
    %v128 = vld [vmem:[#allocation2 + $0x104] sm:$0xf]
    %v129 = vld [vmem:[#allocation2 + $0x108] sm:$0xf]
    %v130 = vld [vmem:[#allocation2 + $0x10c] sm:$0xf]
    %v131 = vld [vmem:[#allocation2 + $0x110] sm:$0xf]
    %v132 = vld [vmem:[#allocation2 + $0x114] sm:$0xf]
    %v133 = vld [vmem:[#allocation2 + $0x118] sm:$0xf]
    %v134 = vld [vmem:[#allocation2 + $0x11c] sm:$0xf]
    %v135 = vld [vmem:[#allocation2 + $0x120] sm:$0xf]
    %v136 = vld [vmem:[#allocation2 + $0x124] sm:$0xf]
    %v137 = vld [vmem:[#allocation2 + $0x128] sm:$0xf]
    %v138 = vld [vmem:[#allocation2 + $0x12c] sm:$0xf]
    %v139 = vld [vmem:[#allocation2 + $0x130] sm:$0xf]
    %v140 = vld [vmem:[#allocation2 + $0x134] sm:$0xf]
    %v141 = vld [vmem:[#allocation2 + $0x138] sm:$0xf]
    %v142 = vld [vmem:[#allocation2 + $0x13c] sm:$0xf]
    %v143 = vld [vmem:[#allocation2 + $0x140] sm:$0xf]
    %v144 = vld [vmem:[#allocation2 + $0x144] sm:$0xf]
    %v145 = vld [vmem:[#allocation2 + $0x148] sm:$0xf]
    %v146 = vld [vmem:[#allocation2 + $0x14c] sm:$0xf]
    %v147 = vld [vmem:[#allocation2 + $0x150] sm:$0xf]
    %v148 = vld [vmem:[#allocation2 + $0x154] sm:$0xf]
    %v149 = vld [vmem:[#allocation2 + $0x158] sm:$0xf]
    %v150 = vld [vmem:[#allocation2 + $0x15c] sm:$0xf]
    %v151 = vld [vmem:[#allocation2 + $0x160] sm:$0xf]
    %v152 = vld [vmem:[#allocation2 + $0x164] sm:$0xf]
    %v153 = vld [vmem:[#allocation2 + $0x168] sm:$0xf]
    %v154 = vld [vmem:[#allocation2 + $0x16c] sm:$0xf]
    %v155 = vld [vmem:[#allocation2 + $0x170] sm:$0xf]
    %v156 = vld [vmem:[#allocation2 + $0x174] sm:$0xf]
    %v157 = vld [vmem:[#allocation2 + $0x178] sm:$0xf]
    %v158 = vld [vmem:[#allocation2 + $0x17c] sm:$0xf]
    %v159 = vld [vmem:[#allocation2 + $0x180] sm:$0xf]
    %v160 = vld [vmem:[#allocation2 + $0x184] sm:$0xf]
    %v161 = vld [vmem:[#allocation2 + $0x188] sm:$0xf]
    %v162 = vld [vmem:[#allocation2 + $0x18c] sm:$0xf]
    %v163 = vld [vmem:[#allocation2 + $0x190] sm:$0xf]
    %v164 = vld [vmem:[#allocation2 + $0x194] sm:$0xf]
    %v165 = vld [vmem:[#allocation2 + $0x198] sm:$0xf]
    %v166 = vld [vmem:[#allocation2 + $0x19c] sm:$0xf]
    %v167 = vld [vmem:[#allocation2 + $0x1a0] sm:$0xf]
    %v168 = vld [vmem:[#allocation2 + $0x1a4] sm:$0xf]
    %v169 = vld [vmem:[#allocation2 + $0x1a8] sm:$0xf]
    %v170 = vld [vmem:[#allocation2 + $0x1ac] sm:$0xf]
    %v171 = vld [vmem:[#allocation2 + $0x1b0] sm:$0xf]
    %v172 = vld [vmem:[#allocation2 + $0x1b4] sm:$0xf]
    %v173 = vld [vmem:[#allocation2 + $0x1b8] sm:$0xf]
    %v174 = vld [vmem:[#allocation2 + $0x1bc] sm:$0xf]
    %v175 = vld [vmem:[#allocation2 + $0x1c0] sm:$0xf]
    %v176 = vld [vmem:[#allocation2 + $0x1c4] sm:$0xf]
    %v177 = vld [vmem:[#allocation2 + $0x1c8] sm:$0xf]
    %v178 = vld [vmem:[#allocation2 + $0x1cc] sm:$0xf]
    %v179 = vld [vmem:[#allocation2 + $0x1d0] sm:$0xf]
    %v180 = vld [vmem:[#allocation2 + $0x1d4] sm:$0xf]
    %v181 = vld [vmem:[#allocation2 + $0x1d8] sm:$0xf]
    %v182 = vld [vmem:[#allocation2 + $0x1dc] sm:$0xf]
    %v183 = vld [vmem:[#allocation2 + $0x1e0] sm:$0xf]
    %v184 = vld [vmem:[#allocation2 + $0x1e4] sm:$0xf]
    %v185 = vld [vmem:[#allocation2 + $0x1e8] sm:$0xf]
    %v186 = vld [vmem:[#allocation2 + $0x1ec] sm:$0xf]
    %v187 = vld [vmem:[#allocation2 + $0x1f0] sm:$0xf]
    %v188 = vld [vmem:[#allocation2 + $0x1f4] sm:$0xf]
    %v189 = vld [vmem:[#allocation2 + $0x1f8] sm:$0xf]
    %v190 = vld [vmem:[#allocation2 + $0x1fc] sm:$0xf]
    %v192 = vperm.slane %v62, 0
    %v198 = vunpack.c.l.b16 %v58
    %v199 = vunpack.c.h.b16 %v58
    %v200 = vunpack.c.l.b16 %v59
    %v201 = vunpack.c.h.b16 %v59
    %v202 = vunpack.c.l.b16 %v60
    %v203 = vunpack.c.h.b16 %v60
    %v204 = vunpack.c.l.b16 %v61
    %v205 = vunpack.c.h.b16 %v61
    %v206 = vpack.c.b16 %v198, %v198
    %v207 = vpack.c.b16 %v199, %v199
    %v208 = vpack.c.b16 %v200, %v200
    %v209 = vpack.c.b16 %v201, %v201
    %v210 = vpack.c.b16 %v202, %v202
    %v211 = vpack.c.b16 %v203, %v203
    %v212 = vpack.c.b16 %v204, %v204
    %v213 = vpack.c.b16 %v205, %v205
    %v350 = vunpack.c.l.b16 %v63
    %v351 = vunpack.c.l.b16 %v64
    %v352 = vunpack.c.l.b16 %v65
    %v353 = vunpack.c.l.b16 %v66
    %v354 = vunpack.c.l.b16 %v67
    %v355 = vunpack.c.l.b16 %v68
    %v356 = vunpack.c.l.b16 %v69
    %v357 = vunpack.c.l.b16 %v70
    %v358 = vunpack.c.l.b16 %v71
    %v359 = vunpack.c.l.b16 %v72
    %v360 = vunpack.c.l.b16 %v73
    %v361 = vunpack.c.l.b16 %v74
    %v362 = vunpack.c.l.b16 %v75
    %v363 = vunpack.c.l.b16 %v76
    %v364 = vunpack.c.l.b16 %v77
    %v365 = vunpack.c.l.b16 %v78
    %v366 = vunpack.c.l.b16 %v79
    %v367 = vunpack.c.l.b16 %v80
    %v368 = vunpack.c.l.b16 %v81
    %v369 = vunpack.c.l.b16 %v82
    %v370 = vunpack.c.l.b16 %v83
    %v371 = vunpack.c.l.b16 %v84
    %v372 = vunpack.c.l.b16 %v85
    %v373 = vunpack.c.l.b16 %v86
    %v374 = vunpack.c.l.b16 %v87
    %v375 = vunpack.c.l.b16 %v88
    %v376 = vunpack.c.l.b16 %v89
    %v377 = vunpack.c.l.b16 %v90
    %v378 = vunpack.c.l.b16 %v91
    %v379 = vunpack.c.l.b16 %v92
    %v380 = vunpack.c.l.b16 %v93
    %v381 = vunpack.c.l.b16 %v94
    %v382 = vunpack.c.l.b16 %v95
    %v383 = vunpack.c.l.b16 %v96
    %v384 = vunpack.c.l.b16 %v97
    %v385 = vunpack.c.l.b16 %v98
    %v386 = vunpack.c.l.b16 %v99
    %v387 = vunpack.c.l.b16 %v100
    %v388 = vunpack.c.l.b16 %v101
    %v389 = vunpack.c.l.b16 %v102
    %v390 = vunpack.c.l.b16 %v103
    %v391 = vunpack.c.l.b16 %v104
    %v392 = vunpack.c.l.b16 %v105
    %v393 = vunpack.c.l.b16 %v106
    %v394 = vunpack.c.l.b16 %v107
    %v395 = vunpack.c.l.b16 %v108
    %v396 = vunpack.c.l.b16 %v109
    %v397 = vunpack.c.l.b16 %v110
    %v398 = vunpack.c.l.b16 %v111
    %v399 = vunpack.c.l.b16 %v112
    %v400 = vunpack.c.l.b16 %v113
    %v401 = vunpack.c.l.b16 %v114
    %v402 = vunpack.c.l.b16 %v115
    %v403 = vunpack.c.l.b16 %v116
    %v404 = vunpack.c.l.b16 %v117
    %v405 = vunpack.c.l.b16 %v118
    %v406 = vunpack.c.l.b16 %v119
    %v407 = vunpack.c.l.b16 %v120
    %v408 = vunpack.c.l.b16 %v121
    %v409 = vunpack.c.l.b16 %v122
    %v410 = vunpack.c.l.b16 %v123
    %v411 = vunpack.c.l.b16 %v124
    %v412 = vunpack.c.l.b16 %v125
    %v413 = vunpack.c.l.b16 %v126
    %v414 = vunpack.c.l.b16 %v127
    %v415 = vunpack.c.l.b16 %v128
    %v416 = vunpack.c.l.b16 %v129
    %v417 = vunpack.c.l.b16 %v130
    %v418 = vunpack.c.l.b16 %v131
    %v419 = vunpack.c.l.b16 %v132
    %v420 = vunpack.c.l.b16 %v133
    %v421 = vunpack.c.l.b16 %v134
    %v422 = vunpack.c.l.b16 %v135
    %v423 = vunpack.c.l.b16 %v136
    %v424 = vunpack.c.l.b16 %v137
    %v425 = vunpack.c.l.b16 %v138
    %v426 = vunpack.c.l.b16 %v139
    %v427 = vunpack.c.l.b16 %v140
    %v428 = vunpack.c.l.b16 %v141
    %v429 = vunpack.c.l.b16 %v142
    %v430 = vunpack.c.l.b16 %v143
    %v431 = vunpack.c.l.b16 %v144
    %v432 = vunpack.c.l.b16 %v145
    %v433 = vunpack.c.l.b16 %v146
    %v434 = vunpack.c.l.b16 %v147
    %v435 = vunpack.c.l.b16 %v148
    %v436 = vunpack.c.l.b16 %v149
    %v437 = vunpack.c.l.b16 %v150
    %v438 = vunpack.c.l.b16 %v151
    %v439 = vunpack.c.l.b16 %v152
    %v440 = vunpack.c.l.b16 %v153
    %v441 = vunpack.c.l.b16 %v154
    %v442 = vunpack.c.l.b16 %v155
    %v443 = vunpack.c.l.b16 %v156
    %v444 = vunpack.c.l.b16 %v157
    %v445 = vunpack.c.l.b16 %v158
    %v446 = vunpack.c.l.b16 %v159
    %v447 = vunpack.c.l.b16 %v160
    %v448 = vunpack.c.l.b16 %v161
    %v449 = vunpack.c.l.b16 %v162
    %v450 = vunpack.c.l.b16 %v163
    %v451 = vunpack.c.l.b16 %v164
    %v452 = vunpack.c.l.b16 %v165
    %v453 = vunpack.c.l.b16 %v166
    %v454 = vunpack.c.l.b16 %v167
    %v455 = vunpack.c.l.b16 %v168
    %v456 = vunpack.c.l.b16 %v169
    %v457 = vunpack.c.l.b16 %v170
    %v458 = vunpack.c.l.b16 %v171
    %v459 = vunpack.c.l.b16 %v172
    %v460 = vunpack.c.l.b16 %v173
    %v461 = vunpack.c.l.b16 %v174
    %v462 = vunpack.c.l.b16 %v175
    %v463 = vunpack.c.l.b16 %v176
    %v464 = vunpack.c.l.b16 %v177
    %v465 = vunpack.c.l.b16 %v178
    %v466 = vunpack.c.l.b16 %v179
    %v467 = vunpack.c.l.b16 %v180
    %v468 = vunpack.c.l.b16 %v181
    %v469 = vunpack.c.l.b16 %v182
    %v470 = vunpack.c.l.b16 %v183
    %v471 = vunpack.c.l.b16 %v184
    %v472 = vunpack.c.l.b16 %v185
    %v473 = vunpack.c.l.b16 %v186
    %v474 = vunpack.c.l.b16 %v187
    %v475 = vunpack.c.l.b16 %v188
    %v476 = vunpack.c.l.b16 %v189
    %v477 = vunpack.c.l.b16 %v190
    %v478 = vpack.c.b16 %v351, %v350
    %v479 = vpack.c.b16 %v353, %v352
    %v480 = vpack.c.b16 %v355, %v354
    %v481 = vpack.c.b16 %v357, %v356
    %v482 = vpack.c.b16 %v359, %v358
    %v483 = vpack.c.b16 %v361, %v360
    %v484 = vpack.c.b16 %v363, %v362
    %v485 = vpack.c.b16 %v365, %v364
    %v486 = vpack.c.b16 %v367, %v366
    %v487 = vpack.c.b16 %v369, %v368
    %v488 = vpack.c.b16 %v371, %v370
    %v489 = vpack.c.b16 %v373, %v372
    %v490 = vpack.c.b16 %v375, %v374
    %v491 = vpack.c.b16 %v377, %v376
    %v492 = vpack.c.b16 %v379, %v378
    %v493 = vpack.c.b16 %v381, %v380
    %v494 = vpack.c.b16 %v383, %v382
    %v495 = vpack.c.b16 %v385, %v384
    %v496 = vpack.c.b16 %v387, %v386
    %v497 = vpack.c.b16 %v389, %v388
    %v498 = vpack.c.b16 %v391, %v390
    %v499 = vpack.c.b16 %v393, %v392
    %v500 = vpack.c.b16 %v395, %v394
    %v501 = vpack.c.b16 %v397, %v396
    %v502 = vpack.c.b16 %v399, %v398
    %v503 = vpack.c.b16 %v401, %v400
    %v504 = vpack.c.b16 %v403, %v402
    %v505 = vpack.c.b16 %v405, %v404
    %v506 = vpack.c.b16 %v407, %v406
    %v507 = vpack.c.b16 %v409, %v408
    %v508 = vpack.c.b16 %v411, %v410
    %v509 = vpack.c.b16 %v413, %v412
    %v510 = vpack.c.b16 %v415, %v414
    %v511 = vpack.c.b16 %v417, %v416
    %v512 = vpack.c.b16 %v419, %v418
    %v513 = vpack.c.b16 %v421, %v420
    %v514 = vpack.c.b16 %v423, %v422
    %v515 = vpack.c.b16 %v425, %v424
    %v516 = vpack.c.b16 %v427, %v426
    %v517 = vpack.c.b16 %v429, %v428
    %v518 = vpack.c.b16 %v431, %v430
    %v519 = vpack.c.b16 %v433, %v432
    %v520 = vpack.c.b16 %v435, %v434
    %v521 = vpack.c.b16 %v437, %v436
    %v522 = vpack.c.b16 %v439, %v438
    %v523 = vpack.c.b16 %v441, %v440
    %v524 = vpack.c.b16 %v443, %v442
    %v525 = vpack.c.b16 %v445, %v444
    %v526 = vpack.c.b16 %v447, %v446
    %v527 = vpack.c.b16 %v449, %v448
    %v528 = vpack.c.b16 %v451, %v450
    %v529 = vpack.c.b16 %v453, %v452
    %v530 = vpack.c.b16 %v455, %v454
    %v531 = vpack.c.b16 %v457, %v456
    %v532 = vpack.c.b16 %v459, %v458
    %v533 = vpack.c.b16 %v461, %v460
    %v534 = vpack.c.b16 %v463, %v462
    %v535 = vpack.c.b16 %v465, %v464
    %v536 = vpack.c.b16 %v467, %v466
    %v537 = vpack.c.b16 %v469, %v468
    %v538 = vpack.c.b16 %v471, %v470
    %v539 = vpack.c.b16 %v473, %v472
    %v540 = vpack.c.b16 %v475, %v474
    %v541 = vpack.c.b16 %v477, %v476
    %606 = vmatpush.bf16.msra.mxu0 %v485
    %607 = vmatpush.bf16.msra.mxu0 %v484
    %608 = vmatpush.bf16.msra.mxu0 %v483
    %609 = vmatpush.bf16.msra.mxu0 %v482
    %610 = vmatpush.bf16.msra.mxu0 %v481
    %611 = vmatpush.bf16.msra.mxu0 %v480
    %612 = vmatpush.bf16.msra.mxu0 %v479
    %613 = vmatpush.bf16.msra.mxu0 %v478
    %614 = vmatmul.bf16.gmra.mxu0 %v206
    %v615 = vpop.f32.mrf.mxu0
    %v616 = vadd.f32 %v192, %v615
    %v617 = vpop.f32.mrf.mxu0
    %618 = vdwg.mxu0
    %619 = vmatpush.bf16.msra.mxu0 %v493
    %620 = vmatpush.bf16.msra.mxu0 %v492
    %621 = vmatpush.bf16.msra.mxu0 %v491
    %622 = vmatpush.bf16.msra.mxu0 %v490
    %623 = vmatpush.bf16.msra.mxu0 %v489
    %624 = vmatpush.bf16.msra.mxu0 %v488
    %625 = vmatpush.bf16.msra.mxu0 %v487
    %626 = vmatpush.bf16.msra.mxu0 %v486
    %627 = vmatmul.bf16.gmra.mxu0 %v207
    %v628 = vpop.f32.mrf.mxu0
    %v629 = vadd.f32 %v616, %v628
    %v630 = vpop.f32.mrf.mxu0
    %631 = vdwg.mxu0
    %632 = vmatpush.bf16.msra.mxu0 %v501
    %633 = vmatpush.bf16.msra.mxu0 %v500
    %634 = vmatpush.bf16.msra.mxu0 %v499
    %635 = vmatpush.bf16.msra.mxu0 %v498
    %636 = vmatpush.bf16.msra.mxu0 %v497
    %637 = vmatpush.bf16.msra.mxu0 %v496
    %638 = vmatpush.bf16.msra.mxu0 %v495
    %639 = vmatpush.bf16.msra.mxu0 %v494
    %640 = vmatmul.bf16.gmra.mxu0 %v208
    %v641 = vpop.f32.mrf.mxu0
    %v642 = vadd.f32 %v629, %v641
    %v643 = vpop.f32.mrf.mxu0
    %644 = vdwg.mxu0
    %645 = vmatpush.bf16.msra.mxu0 %v509
    %646 = vmatpush.bf16.msra.mxu0 %v508
    %647 = vmatpush.bf16.msra.mxu0 %v507
    %648 = vmatpush.bf16.msra.mxu0 %v506
    %649 = vmatpush.bf16.msra.mxu0 %v505
    %650 = vmatpush.bf16.msra.mxu0 %v504
    %651 = vmatpush.bf16.msra.mxu0 %v503
    %652 = vmatpush.bf16.msra.mxu0 %v502
    %653 = vmatmul.bf16.gmra.mxu0 %v209
    %v654 = vpop.f32.mrf.mxu0
    %v655 = vadd.f32 %v642, %v654
    %v656 = vpop.f32.mrf.mxu0
    %657 = vdwg.mxu0
    %658 = vmatpush.bf16.msra.mxu0 %v517
    %659 = vmatpush.bf16.msra.mxu0 %v516
    %660 = vmatpush.bf16.msra.mxu0 %v515
    %661 = vmatpush.bf16.msra.mxu0 %v514
    %662 = vmatpush.bf16.msra.mxu0 %v513
    %663 = vmatpush.bf16.msra.mxu0 %v512
    %664 = vmatpush.bf16.msra.mxu0 %v511
    %665 = vmatpush.bf16.msra.mxu0 %v510
    %666 = vmatmul.bf16.gmra.mxu0 %v210
    %v667 = vpop.f32.mrf.mxu0
    %v668 = vadd.f32 %v655, %v667
    %v669 = vpop.f32.mrf.mxu0
    %670 = vdwg.mxu0
    %671 = vmatpush.bf16.msra.mxu0 %v525
    %672 = vmatpush.bf16.msra.mxu0 %v524
    %673 = vmatpush.bf16.msra.mxu0 %v523
    %674 = vmatpush.bf16.msra.mxu0 %v522
    %675 = vmatpush.bf16.msra.mxu0 %v521
    %676 = vmatpush.bf16.msra.mxu0 %v520
    %677 = vmatpush.bf16.msra.mxu0 %v519
    %678 = vmatpush.bf16.msra.mxu0 %v518
    %679 = vmatmul.bf16.gmra.mxu0 %v211
    %v680 = vpop.f32.mrf.mxu0
    %v681 = vadd.f32 %v668, %v680
    %v682 = vpop.f32.mrf.mxu0
    %683 = vdwg.mxu0
    %684 = vmatpush.bf16.msra.mxu0 %v533
    %685 = vmatpush.bf16.msra.mxu0 %v532
    %686 = vmatpush.bf16.msra.mxu0 %v531
    %687 = vmatpush.bf16.msra.mxu0 %v530
    %688 = vmatpush.bf16.msra.mxu0 %v529
    %689 = vmatpush.bf16.msra.mxu0 %v528
    %690 = vmatpush.bf16.msra.mxu0 %v527
    %691 = vmatpush.bf16.msra.mxu0 %v526
    %692 = vmatmul.bf16.gmra.mxu0 %v212
    %v693 = vpop.f32.mrf.mxu0
    %v694 = vadd.f32 %v681, %v693
    %v695 = vpop.f32.mrf.mxu0
    %696 = vdwg.mxu0
    %697 = vmatpush.bf16.msra.mxu0 %v541
    %698 = vmatpush.bf16.msra.mxu0 %v540
    %699 = vmatpush.bf16.msra.mxu0 %v539
    %700 = vmatpush.bf16.msra.mxu0 %v538
    %701 = vmatpush.bf16.msra.mxu0 %v537
    %702 = vmatpush.bf16.msra.mxu0 %v536
    %703 = vmatpush.bf16.msra.mxu0 %v535
    %704 = vmatpush.bf16.msra.mxu0 %v534
    %705 = vmatmul.bf16.gmra.mxu0 %v213
    %v706 = vpop.f32.mrf.mxu0
    %v707 = vadd.f32 %v694, %v706
    %v708 = vpop.f32.mrf.mxu0
    %709 = vdwg.mxu0
    %v710 = vmax.f32 %v707, 0.0
    %v711 = vld [vmem:[%s1 + $0x8] sm:$0xff]
    %v712 = vld [vmem:[%s3] sm:$0xff]
    %v713 = vld [vmem:[%s3 + $0x8] sm:$0xff]
    %v714 = vld [vmem:[%s3 + $0x10] sm:$0xff]
    %v715 = vld [vmem:[%s3 + $0x18] sm:$0xff]
    %v716 = vld [vmem:[%s3 + $0x20] sm:$0xff]
    %v717 = vld [vmem:[%s3 + $0x28] sm:$0xff]
    %v718 = vld [vmem:[%s3 + $0x30] sm:$0xff]
    %v719 = vld [vmem:[%s3 + $0x38] sm:$0xff]
    %v720 = vld [vmem:[%s3 + $0x40] sm:$0xff]
    %v721 = vld [vmem:[%s3 + $0x48] sm:$0xff]
    %v722 = vld [vmem:[%s3 + $0x50] sm:$0xff]
    %v723 = vld [vmem:[%s3 + $0x58] sm:$0xff]
    %v724 = vld [vmem:[%s3 + $0x60] sm:$0xff]
    %v725 = vld [vmem:[%s3 + $0x68] sm:$0xff]
    %v726 = vld [vmem:[%s3 + $0x70] sm:$0xff]
    %v727 = vld [vmem:[%s3 + $0x78] sm:$0xff]
    %v728 = vld [vmem:[%s3 + $0x80] sm:$0xff]
    %v729 = vld [vmem:[%s3 + $0x88] sm:$0xff]
    %v730 = vld [vmem:[%s3 + $0x90] sm:$0xff]
    %v731 = vld [vmem:[%s3 + $0x98] sm:$0xff]
    %v732 = vld [vmem:[%s3 + $0xa0] sm:$0xff]
    %v733 = vld [vmem:[%s3 + $0xa8] sm:$0xff]
    %v734 = vld [vmem:[%s3 + $0xb0] sm:$0xff]
    %v735 = vld [vmem:[%s3 + $0xb8] sm:$0xff]
    %v736 = vld [vmem:[%s3 + $0xc0] sm:$0xff]
    %v737 = vld [vmem:[%s3 + $0xc8] sm:$0xff]
    %v738 = vld [vmem:[%s3 + $0xd0] sm:$0xff]
    %v739 = vld [vmem:[%s3 + $0xd8] sm:$0xff]
    %v740 = vld [vmem:[%s3 + $0xe0] sm:$0xff]
    %v741 = vld [vmem:[%s3 + $0xe8] sm:$0xff]
    %v742 = vld [vmem:[%s3 + $0xf0] sm:$0xff]
    %v743 = vld [vmem:[%s3 + $0xf8] sm:$0xff]
    %v744 = vld [vmem:[%s3 + $0x100] sm:$0xff]
    %v745 = vld [vmem:[%s3 + $0x108] sm:$0xff]
    %v746 = vld [vmem:[%s3 + $0x110] sm:$0xff]
    %v747 = vld [vmem:[%s3 + $0x118] sm:$0xff]
    %vm748 = vcmask 130048
    %v750 = vsel %vm748, %v711, 0
    %752 = vmatpush.msra.mxu0 0.0
    %753 = vmatpush.msra.mxu0 0.0
    %754 = vmatpush.msra.mxu0 0.0
    %755 = vmatpush.msra.mxu0 0.0
    %756 = vmatpush.msra.mxu0 0.0
    %757 = vmatpush.msra.mxu0 0.0
    %758 = vmatpush.msra.mxu0 0.0
    %759 = vmatpush.msra.mxu0 0.0
    %760 = vmatpush.msra.mxu0 0.0
    %761 = vmatpush.msra.mxu0 0.0
    %762 = vmatpush.msra.mxu0 0.0
    %763 = vmatpush.msra.mxu0 0.0
    %764 = vmatpush.msra.mxu0 0.0
    %765 = vmatpush.msra.mxu0 0.0
    %766 = vmatpush.msra.mxu0 %v746
    %767 = vmatpush.msra.mxu0 %v744
    %768 = vmatmul.f32.gmra.mxu0 %v750
    %v769 = vpop.f32.mrf.mxu0
    %v770 = vadd.f32 0.0, %v769
    %771 = vdwg.mxu0
    %772 = vmatpush.msra.mxu0 0.0
    %773 = vmatpush.msra.mxu0 0.0
    %774 = vmatpush.msra.mxu0 0.0
    %775 = vmatpush.msra.mxu0 0.0
    %776 = vmatpush.msra.mxu0 0.0
    %777 = vmatpush.msra.mxu0 0.0
    %778 = vmatpush.msra.mxu0 0.0
    %779 = vmatpush.msra.mxu0 0.0
    %780 = vmatpush.msra.mxu0 0.0
    %781 = vmatpush.msra.mxu0 0.0
    %782 = vmatpush.msra.mxu0 0.0
    %783 = vmatpush.msra.mxu0 0.0
    %784 = vmatpush.msra.mxu0 0.0
    %785 = vmatpush.msra.mxu0 0.0
    %786 = vmatpush.msra.mxu0 %v747
    %787 = vmatpush.msra.mxu0 %v745
    %788 = vmatmul.f32.gmra.mxu0 %v750
    %v789 = vpop.f32.mrf.mxu0
    %v790 = vadd.f32 0.0, %v789
    %791 = vdwg.mxu0
    %792 = vmatpush.msra.mxu0 %v742
    %793 = vmatpush.msra.mxu0 %v740
    %794 = vmatpush.msra.mxu0 %v738
    %795 = vmatpush.msra.mxu0 %v736
    %796 = vmatpush.msra.mxu0 %v734
    %797 = vmatpush.msra.mxu0 %v732
    %798 = vmatpush.msra.mxu0 %v730
    %799 = vmatpush.msra.mxu0 %v728
    %800 = vmatpush.msra.mxu0 %v726
    %801 = vmatpush.msra.mxu0 %v724
    %802 = vmatpush.msra.mxu0 %v722
    %803 = vmatpush.msra.mxu0 %v720
    %804 = vmatpush.msra.mxu0 %v718
    %805 = vmatpush.msra.mxu0 %v716
    %806 = vmatpush.msra.mxu0 %v714
    %807 = vmatpush.msra.mxu0 %v712
    %808 = vmatmul.f32.gmra.mxu0 %v710
    %v809 = vpop.f32.mrf.mxu0
    %v810 = vadd.f32 %v770, %v809
    %811 = vdwg.mxu0
    %812 = vmatpush.msra.mxu0 %v743
    %813 = vmatpush.msra.mxu0 %v741
    %814 = vmatpush.msra.mxu0 %v739
    %815 = vmatpush.msra.mxu0 %v737
    %816 = vmatpush.msra.mxu0 %v735
    %817 = vmatpush.msra.mxu0 %v733
    %818 = vmatpush.msra.mxu0 %v731
    %819 = vmatpush.msra.mxu0 %v729
    %820 = vmatpush.msra.mxu0 %v727
    %821 = vmatpush.msra.mxu0 %v725
    %822 = vmatpush.msra.mxu0 %v723
    %823 = vmatpush.msra.mxu0 %v721
    %824 = vmatpush.msra.mxu0 %v719
    %825 = vmatpush.msra.mxu0 %v717
    %826 = vmatpush.msra.mxu0 %v715
    %827 = vmatpush.msra.mxu0 %v713
    %828 = vmatmul.f32.gmra.mxu0 %v710
    %v829 = vpop.f32.mrf.mxu0
    %v830 = vadd.f32 %v790, %v829
    %831 = vdwg.mxu0
    %v832 = vld [vmem:[%s1] sm:$0xff]
    %v833 = vmul.f32 %v830, 1.442695
    %v834 = vpow.pop %v833
    %v835 = vmul.f32 %v834, %v832
    %v836 = vadd.f32 %v810, %v835
    %837 = vst [vmem:[%s6] sm:$0xff] %v836
    %v838 = vpack.c.bf16 %v836, %v836
    %v839 = vld [vmem:[%s5 + $0x1] sm:$0xff]
    %v840 = vld [vmem:[#allocation4] sm:$0xff]
    %v841 = vld [vmem:[#allocation4 + $0x8] sm:$0xff]
    %v842 = vld [vmem:[#allocation4 + $0x10] sm:$0xff]
    %v843 = vld [vmem:[#allocation4 + $0x18] sm:$0xff]
    %v844 = vld [vmem:[#allocation4 + $0x20] sm:$0xff]
    %v845 = vld [vmem:[#allocation4 + $0x28] sm:$0xff]
    %v846 = vld [vmem:[#allocation4 + $0x30] sm:$0xff]
    %v847 = vld [vmem:[#allocation4 + $0x38] sm:$0xff]
    %v848 = vld [vmem:[#allocation4 + $0x40] sm:$0xff]
    %v849 = vld [vmem:[#allocation4 + $0x48] sm:$0xff]
    %v850 = vld [vmem:[#allocation4 + $0x50] sm:$0xff]
    %v851 = vld [vmem:[#allocation4 + $0x58] sm:$0xff]
    %v852 = vld [vmem:[#allocation4 + $0x60] sm:$0xff]
    %v853 = vld [vmem:[#allocation4 + $0x68] sm:$0xff]
    %v854 = vld [vmem:[#allocation4 + $0x70] sm:$0xff]
    %v855 = vld [vmem:[#allocation4 + $0x78] sm:$0xff]
    %v857 = vperm.slane %v839, 0
    %v858 = vperm.slane %v839, 1
    %v859 = vperm.slane %v839, 2
    %v860 = vperm.slane %v839, 3
    %v861 = vperm.slane %v839, 4
    %v862 = vperm.slane %v839, 5
    %v863 = vperm.slane %v839, 6
    %v864 = vperm.slane %v839, 7
    %874 = vrot.lane.b32.xlu0 %v838, 64
    %v875 = vpop.permute.xlu0 %874
    %v892 = vunpack.c.l.b16 %v840
    %v893 = vunpack.c.h.b16 %v840
    %v894 = vunpack.c.l.b16 %v841
    %v895 = vunpack.c.h.b16 %v841
    %v896 = vunpack.c.l.b16 %v842
    %v897 = vunpack.c.h.b16 %v842
    %v898 = vunpack.c.l.b16 %v843
    %v899 = vunpack.c.h.b16 %v843
    %v900 = vunpack.c.l.b16 %v844
    %v901 = vunpack.c.h.b16 %v844
    %v902 = vunpack.c.l.b16 %v845
    %v903 = vunpack.c.h.b16 %v845
    %v904 = vunpack.c.l.b16 %v846
    %v905 = vunpack.c.h.b16 %v846
    %v906 = vunpack.c.l.b16 %v847
    %v907 = vunpack.c.h.b16 %v847
    %v908 = vunpack.c.l.b16 %v848
    %v909 = vunpack.c.h.b16 %v848
    %v910 = vunpack.c.l.b16 %v849
    %v911 = vunpack.c.h.b16 %v849
    %v912 = vunpack.c.l.b16 %v850
    %v913 = vunpack.c.h.b16 %v850
    %v914 = vunpack.c.l.b16 %v851
    %v915 = vunpack.c.h.b16 %v851
    %v916 = vunpack.c.l.b16 %v852
    %v917 = vunpack.c.h.b16 %v852
    %v918 = vunpack.c.l.b16 %v853
    %v919 = vunpack.c.h.b16 %v853
    %v920 = vunpack.c.l.b16 %v854
    %v921 = vunpack.c.h.b16 %v854
    %v922 = vunpack.c.l.b16 %v855
    %v923 = vunpack.c.h.b16 %v855
    %v924 = vpack.c.b16 %v900, %v892
    %v925 = vpack.c.b16 %v901, %v893
    %v926 = vpack.c.b16 %v902, %v894
    %v927 = vpack.c.b16 %v903, %v895
    %v928 = vpack.c.b16 %v904, %v896
    %v929 = vpack.c.b16 %v905, %v897
    %v930 = vpack.c.b16 %v906, %v898
    %v931 = vpack.c.b16 %v907, %v899
    %v932 = vpack.c.b16 %v916, %v908
    %v933 = vpack.c.b16 %v917, %v909
    %v934 = vpack.c.b16 %v918, %v910
    %v935 = vpack.c.b16 %v919, %v911
    %v936 = vpack.c.b16 %v920, %v912
    %v937 = vpack.c.b16 %v921, %v913
    %v938 = vpack.c.b16 %v922, %v914
    %v939 = vpack.c.b16 %v923, %v915
    %vm956 = vcmask 261120
    %v958 = vsel %vm956, %v875, 0
    %960 = vmatpush.bf16.msra.mxu0 0
    %961 = vmatpush.bf16.msra.mxu0 0
    %962 = vmatpush.bf16.msra.mxu0 0
    %963 = vmatpush.bf16.msra.mxu0 0
    %964 = vmatpush.bf16.msra.mxu0 0
    %965 = vmatpush.bf16.msra.mxu0 0
    %966 = vmatpush.bf16.msra.mxu0 %v932
    %967 = vmatpush.bf16.msra.mxu0 %v924
    %968 = vmatmul.bf16.gmra.mxu0 %v958
    %v969 = vpop.f32.mrf.mxu0
    %v970 = vadd.f32 %v857, %v969
    %v971 = vpop.f32.mrf.mxu0
    %972 = vdwg.mxu0
    %973 = vmatpush.bf16.msra.mxu0 0
    %974 = vmatpush.bf16.msra.mxu0 0
    %975 = vmatpush.bf16.msra.mxu0 0
    %976 = vmatpush.bf16.msra.mxu0 0
    %977 = vmatpush.bf16.msra.mxu0 0
    %978 = vmatpush.bf16.msra.mxu0 0
    %979 = vmatpush.bf16.msra.mxu0 %v933
    %980 = vmatpush.bf16.msra.mxu0 %v925
    %981 = vmatmul.bf16.gmra.mxu0 %v958
    %v982 = vpop.f32.mrf.mxu0
    %v983 = vadd.f32 %v858, %v982
    %v984 = vpop.f32.mrf.mxu0
    %985 = vdwg.mxu0
    %986 = vmatpush.bf16.msra.mxu0 0
    %987 = vmatpush.bf16.msra.mxu0 0
    %988 = vmatpush.bf16.msra.mxu0 0
    %989 = vmatpush.bf16.msra.mxu0 0
    %990 = vmatpush.bf16.msra.mxu0 0
    %991 = vmatpush.bf16.msra.mxu0 0
    %992 = vmatpush.bf16.msra.mxu0 %v934
    %993 = vmatpush.bf16.msra.mxu0 %v926
    %994 = vmatmul.bf16.gmra.mxu0 %v958
    %v995 = vpop.f32.mrf.mxu0
    %v996 = vadd.f32 %v859, %v995
    %v997 = vpop.f32.mrf.mxu0
    %998 = vdwg.mxu0
    %999 = vmatpush.bf16.msra.mxu0 0
    %1000 = vmatpush.bf16.msra.mxu0 0
    %1001 = vmatpush.bf16.msra.mxu0 0
    %1002 = vmatpush.bf16.msra.mxu0 0
    %1003 = vmatpush.bf16.msra.mxu0 0
    %1004 = vmatpush.bf16.msra.mxu0 0
    %1005 = vmatpush.bf16.msra.mxu0 %v935
    %1006 = vmatpush.bf16.msra.mxu0 %v927
    %1007 = vmatmul.bf16.gmra.mxu0 %v958
    %v1008 = vpop.f32.mrf.mxu0
    %v1009 = vadd.f32 %v860, %v1008
    %v1010 = vpop.f32.mrf.mxu0
    %1011 = vdwg.mxu0
    %1012 = vmatpush.bf16.msra.mxu0 0
    %1013 = vmatpush.bf16.msra.mxu0 0
    %1014 = vmatpush.bf16.msra.mxu0 0
    %1015 = vmatpush.bf16.msra.mxu0 0
    %1016 = vmatpush.bf16.msra.mxu0 0
    %1017 = vmatpush.bf16.msra.mxu0 0
    %1018 = vmatpush.bf16.msra.mxu0 %v936
    %1019 = vmatpush.bf16.msra.mxu0 %v928
    %1020 = vmatmul.bf16.gmra.mxu0 %v958
    %v1021 = vpop.f32.mrf.mxu0
    %v1022 = vadd.f32 %v861, %v1021
    %v1023 = vpop.f32.mrf.mxu0
    %1024 = vdwg.mxu0
    %1025 = vmatpush.bf16.msra.mxu0 0
    %1026 = vmatpush.bf16.msra.mxu0 0
    %1027 = vmatpush.bf16.msra.mxu0 0
    %1028 = vmatpush.bf16.msra.mxu0 0
    %1029 = vmatpush.bf16.msra.mxu0 0
    %1030 = vmatpush.bf16.msra.mxu0 0
    %1031 = vmatpush.bf16.msra.mxu0 %v937
    %1032 = vmatpush.bf16.msra.mxu0 %v929
    %1033 = vmatmul.bf16.gmra.mxu0 %v958
    %v1034 = vpop.f32.mrf.mxu0
    %v1035 = vadd.f32 %v862, %v1034
    %v1036 = vpop.f32.mrf.mxu0
    %1037 = vdwg.mxu0
    %1038 = vmatpush.bf16.msra.mxu0 0
    %1039 = vmatpush.bf16.msra.mxu0 0
    %1040 = vmatpush.bf16.msra.mxu0 0
    %1041 = vmatpush.bf16.msra.mxu0 0
    %1042 = vmatpush.bf16.msra.mxu0 0
    %1043 = vmatpush.bf16.msra.mxu0 0
    %1044 = vmatpush.bf16.msra.mxu0 %v938
    %1045 = vmatpush.bf16.msra.mxu0 %v930
    %1046 = vmatmul.bf16.gmra.mxu0 %v958
    %v1047 = vpop.f32.mrf.mxu0
    %v1048 = vadd.f32 %v863, %v1047
    %v1049 = vpop.f32.mrf.mxu0
    %1050 = vdwg.mxu0
    %1051 = vmatpush.bf16.msra.mxu0 0
    %1052 = vmatpush.bf16.msra.mxu0 0
    %1053 = vmatpush.bf16.msra.mxu0 0
    %1054 = vmatpush.bf16.msra.mxu0 0
    %1055 = vmatpush.bf16.msra.mxu0 0
    %1056 = vmatpush.bf16.msra.mxu0 0
    %1057 = vmatpush.bf16.msra.mxu0 %v939
    %1058 = vmatpush.bf16.msra.mxu0 %v931
    %1059 = vmatmul.bf16.gmra.mxu0 %v958
    %v1060 = vpop.f32.mrf.mxu0
    %v1061 = vadd.f32 %v864, %v1060
    %v1062 = vpop.f32.mrf.mxu0
    %1063 = vdwg.mxu0
    %1064 = vst [vmem:[%s7] sm:$0xff] %v970
    %1065 = vst [vmem:[%s7 + $0x8] sm:$0xff] %v983
    %1066 = vst [vmem:[%s7 + $0x10] sm:$0xff] %v996
    %1067 = vst [vmem:[%s7 + $0x18] sm:$0xff] %v1009
    %1068 = vst [vmem:[%s7 + $0x20] sm:$0xff] %v1022
    %1069 = vst [vmem:[%s7 + $0x28] sm:$0xff] %v1035
    %1070 = vst [vmem:[%s7 + $0x30] sm:$0xff] %v1048
    %1071 = vst [vmem:[%s7 + $0x38] sm:$0xff] %v1061
    // Predicated region
    $region34: #{concept_learning_vae_forward.1} parent=1 // pred_check
      _
    $region35: #{concept_learning_vae_forward.1} parent=1 // pred_check_branch
      %1073 = sbr.rel (0) target = $region37
    $region36: #{concept_learning_vae_forward.1} parent=1 // pred_region
      _
    $region37: #{concept_learning_vae_forward.1} parent=1 // pred_fallthru
      _
    // Predicated region
    $region38: #{concept_learning_vae_forward.1} parent=1 // pred_check
      _
    $region39: #{concept_learning_vae_forward.1} parent=1 // pred_check_branch
      %1075 = sbr.rel (0) target = $region41
    $region40: #{concept_learning_vae_forward.1} parent=1 // pred_region
      _
    $region41: #{concept_learning_vae_forward.1} parent=1 // pred_fallthru
      _
    // Predicated region
    $region42: #{concept_learning_vae_forward.1} parent=1 // pred_check
      _
    $region43: #{concept_learning_vae_forward.1} parent=1 // pred_check_branch
      %1077 = sbr.rel (0) target = $region45
    $region44: #{concept_learning_vae_forward.1} parent=1 // pred_region
      _
    $region45: #{concept_learning_vae_forward.1} parent=1 // pred_fallthru
      _
    // Predicated region
    $region46: #{concept_learning_vae_forward.1} parent=1 // pred_check
      _
    $region47: #{concept_learning_vae_forward.1} parent=1 // pred_check_branch
      %1079 = sbr.rel (0) target = $region49
    $region48: #{concept_learning_vae_forward.1} parent=1 // pred_region
      _
    $region49: #{concept_learning_vae_forward.1} parent=1 // pred_fallthru
      _
    %1080 = vsyncpa [#allocation3], 1
    %1081 = vsyncpa [#allocation5], 1

</llo_original>
